<compile_context>
chip_gen: v7x
topology: tpu7x:2x2x1
jax: 0.10.0
libtpu: 0.0.40
codegen_flags: <defaults>
</compile_context>

<pallas_src>
import functools

import numpy as np
import jax
import jax.numpy as jnp
from jax.experimental import pallas as pl
from jax.experimental.pallas import tpu as pltpu


def _round_up(a: int, b: int) -> int:
    return (a + b - 1) // b * b


def _tensorcores_per_chip() -> int:
    """Best-effort TCs-per-chip query (v7x/v4/v5p have >1; v5e/v6e have 1)."""
    try:
        kind = str(getattr(jax.devices()[0], "device_kind", "")).lower()
        return 2 if any(m in kind for m in ("v7", "v4", "v5p")) else 1
    except Exception:  # pragma: no cover - conservative fallback
        return 1


def _fractal_kernel(x_ref, m_ref, y_ref, *, max_depth, inv_smoothing_width,
                    use_argmax, row_group):
    """x_ref: [1, TB]; m_ref: [R, Np] stacked constants; y_ref: [1, TB]."""
    Np = row_group                       # sublane-aligned node-row group (mult of 8)

    x = x_ref[...]                       # [1, TB]  batch on lanes
    M = m_ref[...]                       # [R, Np]  [L^T ; R^T ; split ; values] (padded)
    TB = x.shape[1]

    # root node = node 0; normalized coordinate starts at x (clipped to [0,1]).
    # Padded rows (N..Np-1) start at 0 and stay 0 (their M rows are zero).
    p = (jax.lax.broadcasted_iota(jnp.int32, (Np, TB), 0) == 0).astype(jnp.float32)
    t = jnp.clip(x, 0.0, 1.0)            # [1, TB] (also sanitizes garbage pad lanes)

    eps = 1e-6
    for _ in range(max_depth):           # static unroll (small max_depth)
        # One fused MXU matmul per depth; all result slices are 8-row aligned.
        r = jnp.dot(M, p, preferred_element_type=jnp.float32)   # [R, TB]
        p_left = r[0:Np, :]                                     # [Np, TB]
        p_right = r[Np:2 * Np, :]                               # [Np, TB]
        s = r[2 * Np:2 * Np + 1, :]                             # [1, TB]

        # Single fused reciprocal: 1/s and 1/(1-s) via 1/(s*(1-s)).
        inv = pl.reciprocal(jnp.maximum(s * (1.0 - s), eps), approx=False)
        t_left = t * (1.0 - s) * inv                            # == t / s
        t_right = (t - s) * s * inv                             # == (t - s) / (1 - s)

        if use_argmax:
            # Hard routing: one select per vreg instead of mul/mul/add + w bcast.
            go_right = t >= s                                   # [1, TB] bool
            p = jnp.where(go_right, p_right, p_left)            # [Np, TB]
            t = jnp.clip(jnp.where(go_right, t_right, t_left), 0.0, 1.0)
        else:
            w = jax.nn.sigmoid((t - s) * inv_smoothing_width)   # [1, TB]
            # FMA-form blends: single broadcast of w, no (1-w) term.
            p = p_left + w * (p_right - p_left)                 # [Np, TB]
            t = jnp.clip(t_left + w * (t_right - t_left), 0.0, 1.0)

    # Final expected value: values row of the stacked matrix against p.
    vals_row = M[2 * Np + 1:2 * Np + 2, :]                      # [1, Np]
    y_ref[...] = jnp.dot(vals_row, p, preferred_element_type=jnp.float32)  # [1, TB]


def fractal1d_forward(x, split_points_param, values_param, left_matrix,
                      right_matrix, *, num_dupes, max_depth,
                      smoothing_width=0.1, use_argmax=False, tile_b=32768):
    """Pallas TPU implementation of Fractal1D.forward. x: [B] -> [B]."""
    # ---- parameter transforms (module @property glue, plain JAX) ----
    split_points = jax.nn.sigmoid(split_points_param * 4.0 - 2.0)   # [N]
    values = jnp.tile(values_param * 3.0 + 1.0, (num_dupes,))       # [N]
    N = int(split_points.shape[0])

    # ---- stacked constant matrix, rows AND columns padded to the 8-row group ----
    Np = _round_up(max(N, 1), 8)
    R = 2 * Np + 8                         # rows: L^T | R^T | [split; values; pad]
    M = jnp.zeros((R, Np), jnp.float32)
    M = M.at[0:N, 0:N].set(left_matrix.astype(jnp.float32).T)
    M = M.at[Np:Np + N, 0:N].set(right_matrix.astype(jnp.float32).T)
    M = M.at[2 * Np, 0:N].set(split_points.astype(jnp.float32))
    M = M.at[2 * Np + 1, 0:N].set(values.astype(jnp.float32))

    # ---- lane-dense batch tiling (no wrapper-side pad/slice HBM passes) ----
    B = int(x.shape[0])
    b128 = _round_up(B, 128)
    tb = min(_round_up(max(int(tile_b), 128), 128), b128)
    if _tensorcores_per_chip() > 1 and pl.cdiv(B, tb) < 2 and tb > 128:
        # keep >=2 grid steps so both TensorCores get work (v7x only)
        tb = max(128, _round_up(pl.cdiv(b128, 2), 128))
    grid_b = pl.cdiv(B, tb)                # ragged last tile handled by clamped DMA

    x2 = x.astype(jnp.float32).reshape(1, B)

    kernel = functools.partial(
        _fractal_kernel,
        max_depth=int(max_depth),
        inv_smoothing_width=float(1.0 / float(smoothing_width)),
        use_argmax=bool(use_argmax),
        row_group=Np,
    )

    # ~320 B of VMEM per batch element (p, r, blends, double-buffered x/y) + slack;
    # raise the scoped limit for big tiles (v5e default is 16 MiB) but stay well
    # under v7x's 64 MiB physical VMEM.
    vmem_limit = int(min(max(32 << 20, 320 * tb + (1 << 20)), 48 << 20))

    y2 = pl.pallas_call(
        kernel,
        out_shape=jax.ShapeDtypeStruct((1, B), jnp.float32),
        grid_spec=pltpu.PrefetchScalarGridSpec(
            num_scalar_prefetch=0,
            grid=(grid_b,),
            in_specs=[
                pl.BlockSpec((1, tb), lambda i: (0, i)),    # x, lane-dense
                pl.BlockSpec((R, Np), lambda i: (0, 0)),    # stacked constants
            ],
            out_specs=pl.BlockSpec((1, tb), lambda i: (0, i)),  # y, lane-dense
        ),
        compiler_params=pltpu.CompilerParams(
            dimension_semantics=("parallel",),
            vmem_limit_bytes=vmem_limit),
    )(x2, M)
    return y2.reshape(B)


def fractal1d_reference(x, split_points_param, values_param, left_matrix,
                        right_matrix, *, num_dupes, max_depth,
                        smoothing_width=0.1, use_argmax=False):
    """Pure-JAX reference with identical math (for correctness check)."""
    sp = jax.nn.sigmoid(split_points_param * 4.0 - 2.0)
    vals = jnp.tile(values_param * 3.0 + 1.0, (num_dupes,))
    N = sp.shape[0]
    B = x.shape[0]
    p = jnp.zeros((B, N), jnp.float32).at[:, 0].set(1.0)
    t = jnp.clip(x.astype(jnp.float32), 0.0, 1.0)[:, None]
    eps = 1e-6
    for _ in range(max_depth):
        s = jnp.sum(p * sp[None, :], axis=1, keepdims=True)
        if use_argmax:
            w = (t >= s).astype(jnp.float32)
        else:
            w = jax.nn.sigmoid((t - s) / smoothing_width)
        p = (1.0 - w) * (p @ left_matrix) + w * (p @ right_matrix)
        t_left = t / jnp.maximum(s, eps)
        t_right = (t - s) / jnp.maximum(1.0 - s, eps)
        t = jnp.clip((1.0 - w) * t_left + w * t_right, 0.0, 1.0)
    return jnp.sum(p * vals[None, :], axis=1)


if __name__ == "__main__":
    # ---- deterministic parameter init (mirrors Fractal1D.__init__) ----
    num_values, num_dupes = 3, 2
    N = num_values * num_dupes
    smoothing_width = 0.1
    max_depth = 5

    key = jax.random.PRNGKey(0)
    k_sp, k_l, k_r, k_x = jax.random.split(key, 4)

    split_points_param = jax.random.uniform(k_sp, (N,), jnp.float32) * 0.5 + 0.25
    values_param = jnp.linspace(0.0, 1.0, num_values).astype(jnp.float32)

    left_idx = jax.random.randint(k_l, (N,), 0, N)
    right_idx = jax.random.randint(k_r, (N,), 0, N)
    left_matrix = jax.nn.one_hot(left_idx, N, dtype=jnp.float32)
    right_matrix = jax.nn.one_hot(right_idx, N, dtype=jnp.float32)

    # batch=16 -> single (partial) tile; batch=300 with tile_b=128 -> 3 grid
    # steps incl. a ragged last tile (exercises the in-kernel tail handling).
    for batch, tile_b in ((16, 32768), (300, 128)):
        x = jax.random.uniform(k_x, (batch,), jnp.float32)
        for use_argmax in (False, True):
            y = fractal1d_forward(
                x, split_points_param, values_param, left_matrix, right_matrix,
                num_dupes=num_dupes, max_depth=max_depth,
                smoothing_width=smoothing_width, use_argmax=use_argmax,
                tile_b=tile_b)
            y = jax.block_until_ready(y)
            y_ref = fractal1d_reference(
                x, split_points_param, values_param, left_matrix, right_matrix,
                num_dupes=num_dupes, max_depth=max_depth,
                smoothing_width=smoothing_width, use_argmax=use_argmax)
            assert y.shape == (batch,)
            # tolerance leaves margin for reciprocal-vs-divide rounding
            np.testing.assert_allclose(np.asarray(y), np.asarray(y_ref),
                                       rtol=1e-3, atol=1e-3)

    print("KERNEL_OK")
</pallas_src>

<mosaic_0001>
module attributes {stable_mosaic.version = 11 : i64} {
  func.func @_fractal_kernel(%arg0: i32, %arg1: memref<1x128xf32, #tpu.memory_space<vmem>>, %arg2: memref<24x8xf32, #tpu.memory_space<vmem>>, %arg3: memref<1x128xf32, #tpu.memory_space<vmem>>) attributes {dimension_semantics = [#tpu.dimension_semantics<parallel>], iteration_bounds = array<i64: 1>, scalar_prefetch = 0 : i64, scratch_operands = 0 : i64, tpu.core_type = #tpu.core_type<tc>, window_params = [{transform_indices = @transform_0, window_bounds = array<i64: 1, 128>}, {pipeline_mode = #tpu.pipeline_mode<synchronous>, transform_indices = @transform_1, window_bounds = array<i64: 24, 8>}, {transform_indices = @transform_2, window_bounds = array<i64: 1, 128>}]} {
    %c0 = arith.constant 0 : index
    %c0_0 = arith.constant 0 : index
    %0 = vector.load %arg1[%c0, %c0_0] : memref<1x128xf32, #tpu.memory_space<vmem>>, vector<1x128xf32>
    %c0_1 = arith.constant 0 : index
    %c0_2 = arith.constant 0 : index
    %1 = vector.load %arg2[%c0_1, %c0_2] : memref<24x8xf32, #tpu.memory_space<vmem>>, vector<24x8xf32>
    %2 = tpu.iota {dimensions = array<i32: 0>} : vector<8x128xi32>
    %c0_i32 = arith.constant 0 : i32
    %3 = vector.broadcast %c0_i32 : i32 to vector<8x128xi32>
    %4 = arith.cmpi eq, %2, %3 : vector<8x128xi32>
    %5 = arith.extui %4 : vector<8x128xi1> to vector<8x128xi32>
    %6 = arith.sitofp %5 : vector<8x128xi32> to vector<8x128xf32>
    %cst = arith.constant 0.000000e+00 : f32
    %cst_3 = arith.constant 1.000000e+00 : f32
    %7 = vector.broadcast %cst : f32 to vector<1x128xf32>
    %8 = arith.maximumf %7, %0 : vector<1x128xf32>
    %9 = vector.broadcast %cst_3 : f32 to vector<1x128xf32>
    %10 = arith.minimumf %9, %8 : vector<1x128xf32>
    %cst_4 = arith.constant dense<0.000000e+00> : vector<24x128xf32>
    %11 = tpu.matmul %1, %6, %cst_4 {dimension_numbers = #tpu.dot_dimension_numbers<[1], [0], [0], [1], [0, 0, 1, 1], [], []>} : vector<24x8xf32>, vector<8x128xf32>, vector<24x128xf32> -> vector<24x128xf32>
    %12 = vector.extract_strided_slice %11 {offsets = [0, 0], sizes = [8, 128], strides = [1, 1]} : vector<24x128xf32> to vector<8x128xf32>
    %13 = vector.extract_strided_slice %11 {offsets = [8, 0], sizes = [8, 128], strides = [1, 1]} : vector<24x128xf32> to vector<8x128xf32>
    %14 = vector.extract_strided_slice %11 {offsets = [16, 0], sizes = [1, 128], strides = [1, 1]} : vector<24x128xf32> to vector<1x128xf32>
    %cst_5 = arith.constant 1.000000e+00 : f32
    %15 = vector.broadcast %cst_5 : f32 to vector<1x128xf32>
    %16 = arith.subf %15, %14 : vector<1x128xf32>
    %17 = arith.mulf %14, %16 : vector<1x128xf32>
    %cst_6 = arith.constant 9.99999997E-7 : f32
    %18 = vector.broadcast %cst_6 : f32 to vector<1x128xf32>
    %19 = arith.maximumf %17, %18 : vector<1x128xf32>
    %20 = tpu.reciprocal %19 : vector<1x128xf32> -> vector<1x128xf32>
    %cst_7 = arith.constant 1.000000e+00 : f32
    %21 = vector.broadcast %cst_7 : f32 to vector<1x128xf32>
    %22 = arith.subf %21, %14 : vector<1x128xf32>
    %23 = arith.mulf %10, %22 : vector<1x128xf32>
    %24 = arith.mulf %23, %20 : vector<1x128xf32>
    %25 = arith.subf %10, %14 : vector<1x128xf32>
    %26 = arith.mulf %25, %14 : vector<1x128xf32>
    %27 = arith.mulf %26, %20 : vector<1x128xf32>
    %28 = arith.subf %10, %14 : vector<1x128xf32>
    %cst_8 = arith.constant 1.000000e+01 : f32
    %29 = vector.broadcast %cst_8 : f32 to vector<1x128xf32>
    %30 = arith.mulf %28, %29 : vector<1x128xf32>
    %31 = arith.negf %30 : vector<1x128xf32>
    %32 = math.exp %31 : vector<1x128xf32>
    %cst_9 = arith.constant 1.000000e+00 : f32
    %33 = vector.broadcast %cst_9 : f32 to vector<1x128xf32>
    %34 = arith.addf %33, %32 : vector<1x128xf32>
    %35 = arith.divf %33, %34 : vector<1x128xf32>
    %36 = arith.subf %13, %12 : vector<8x128xf32>
    %37 = vector.broadcast %35 : vector<1x128xf32> to vector<8x128xf32>
    %38 = arith.mulf %37, %36 : vector<8x128xf32>
    %39 = arith.addf %12, %38 : vector<8x128xf32>
    %40 = arith.subf %27, %24 : vector<1x128xf32>
    %41 = arith.mulf %35, %40 : vector<1x128xf32>
    %42 = arith.addf %24, %41 : vector<1x128xf32>
    %cst_10 = arith.constant 0.000000e+00 : f32
    %cst_11 = arith.constant 1.000000e+00 : f32
    %43 = vector.broadcast %cst_10 : f32 to vector<1x128xf32>
    %44 = arith.maximumf %43, %42 : vector<1x128xf32>
    %45 = vector.broadcast %cst_11 : f32 to vector<1x128xf32>
    %46 = arith.minimumf %45, %44 : vector<1x128xf32>
    %cst_12 = arith.constant dense<0.000000e+00> : vector<24x128xf32>
    %47 = tpu.matmul %1, %39, %cst_12 {dimension_numbers = #tpu.dot_dimension_numbers<[1], [0], [0], [1], [0, 0, 1, 1], [], []>} : vector<24x8xf32>, vector<8x128xf32>, vector<24x128xf32> -> vector<24x128xf32>
    %48 = vector.extract_strided_slice %47 {offsets = [0, 0], sizes = [8, 128], strides = [1, 1]} : vector<24x128xf32> to vector<8x128xf32>
    %49 = vector.extract_strided_slice %47 {offsets = [8, 0], sizes = [8, 128], strides = [1, 1]} : vector<24x128xf32> to vector<8x128xf32>
    %50 = vector.extract_strided_slice %47 {offsets = [16, 0], sizes = [1, 128], strides = [1, 1]} : vector<24x128xf32> to vector<1x128xf32>
    %cst_13 = arith.constant 1.000000e+00 : f32
    %51 = vector.broadcast %cst_13 : f32 to vector<1x128xf32>
    %52 = arith.subf %51, %50 : vector<1x128xf32>
    %53 = arith.mulf %50, %52 : vector<1x128xf32>
    %cst_14 = arith.constant 9.99999997E-7 : f32
    %54 = vector.broadcast %cst_14 : f32 to vector<1x128xf32>
    %55 = arith.maximumf %53, %54 : vector<1x128xf32>
    %56 = tpu.reciprocal %55 : vector<1x128xf32> -> vector<1x128xf32>
    %cst_15 = arith.constant 1.000000e+00 : f32
    %57 = vector.broadcast %cst_15 : f32 to vector<1x128xf32>
    %58 = arith.subf %57, %50 : vector<1x128xf32>
    %59 = arith.mulf %46, %58 : vector<1x128xf32>
    %60 = arith.mulf %59, %56 : vector<1x128xf32>
    %61 = arith.subf %46, %50 : vector<1x128xf32>
    %62 = arith.mulf %61, %50 : vector<1x128xf32>
    %63 = arith.mulf %62, %56 : vector<1x128xf32>
    %64 = arith.subf %46, %50 : vector<1x128xf32>
    %cst_16 = arith.constant 1.000000e+01 : f32
    %65 = vector.broadcast %cst_16 : f32 to vector<1x128xf32>
    %66 = arith.mulf %64, %65 : vector<1x128xf32>
    %67 = arith.negf %66 : vector<1x128xf32>
    %68 = math.exp %67 : vector<1x128xf32>
    %cst_17 = arith.constant 1.000000e+00 : f32
    %69 = vector.broadcast %cst_17 : f32 to vector<1x128xf32>
    %70 = arith.addf %69, %68 : vector<1x128xf32>
    %71 = arith.divf %69, %70 : vector<1x128xf32>
    %72 = arith.subf %49, %48 : vector<8x128xf32>
    %73 = vector.broadcast %71 : vector<1x128xf32> to vector<8x128xf32>
    %74 = arith.mulf %73, %72 : vector<8x128xf32>
    %75 = arith.addf %48, %74 : vector<8x128xf32>
    %76 = arith.subf %63, %60 : vector<1x128xf32>
    %77 = arith.mulf %71, %76 : vector<1x128xf32>
    %78 = arith.addf %60, %77 : vector<1x128xf32>
    %cst_18 = arith.constant 0.000000e+00 : f32
    %cst_19 = arith.constant 1.000000e+00 : f32
    %79 = vector.broadcast %cst_18 : f32 to vector<1x128xf32>
    %80 = arith.maximumf %79, %78 : vector<1x128xf32>
    %81 = vector.broadcast %cst_19 : f32 to vector<1x128xf32>
    %82 = arith.minimumf %81, %80 : vector<1x128xf32>
    %cst_20 = arith.constant dense<0.000000e+00> : vector<24x128xf32>
    %83 = tpu.matmul %1, %75, %cst_20 {dimension_numbers = #tpu.dot_dimension_numbers<[1], [0], [0], [1], [0, 0, 1, 1], [], []>} : vector<24x8xf32>, vector<8x128xf32>, vector<24x128xf32> -> vector<24x128xf32>
    %84 = vector.extract_strided_slice %83 {offsets = [0, 0], sizes = [8, 128], strides = [1, 1]} : vector<24x128xf32> to vector<8x128xf32>
    %85 = vector.extract_strided_slice %83 {offsets = [8, 0], sizes = [8, 128], strides = [1, 1]} : vector<24x128xf32> to vector<8x128xf32>
    %86 = vector.extract_strided_slice %83 {offsets = [16, 0], sizes = [1, 128], strides = [1, 1]} : vector<24x128xf32> to vector<1x128xf32>
    %cst_21 = arith.constant 1.000000e+00 : f32
    %87 = vector.broadcast %cst_21 : f32 to vector<1x128xf32>
    %88 = arith.subf %87, %86 : vector<1x128xf32>
    %89 = arith.mulf %86, %88 : vector<1x128xf32>
    %cst_22 = arith.constant 9.99999997E-7 : f32
    %90 = vector.broadcast %cst_22 : f32 to vector<1x128xf32>
    %91 = arith.maximumf %89, %90 : vector<1x128xf32>
    %92 = tpu.reciprocal %91 : vector<1x128xf32> -> vector<1x128xf32>
    %cst_23 = arith.constant 1.000000e+00 : f32
    %93 = vector.broadcast %cst_23 : f32 to vector<1x128xf32>
    %94 = arith.subf %93, %86 : vector<1x128xf32>
    %95 = arith.mulf %82, %94 : vector<1x128xf32>
    %96 = arith.mulf %95, %92 : vector<1x128xf32>
    %97 = arith.subf %82, %86 : vector<1x128xf32>
    %98 = arith.mulf %97, %86 : vector<1x128xf32>
    %99 = arith.mulf %98, %92 : vector<1x128xf32>
    %100 = arith.subf %82, %86 : vector<1x128xf32>
    %cst_24 = arith.constant 1.000000e+01 : f32
    %101 = vector.broadcast %cst_24 : f32 to vector<1x128xf32>
    %102 = arith.mulf %100, %101 : vector<1x128xf32>
    %103 = arith.negf %102 : vector<1x128xf32>
    %104 = math.exp %103 : vector<1x128xf32>
    %cst_25 = arith.constant 1.000000e+00 : f32
    %105 = vector.broadcast %cst_25 : f32 to vector<1x128xf32>
    %106 = arith.addf %105, %104 : vector<1x128xf32>
    %107 = arith.divf %105, %106 : vector<1x128xf32>
    %108 = arith.subf %85, %84 : vector<8x128xf32>
    %109 = vector.broadcast %107 : vector<1x128xf32> to vector<8x128xf32>
    %110 = arith.mulf %109, %108 : vector<8x128xf32>
    %111 = arith.addf %84, %110 : vector<8x128xf32>
    %112 = arith.subf %99, %96 : vector<1x128xf32>
    %113 = arith.mulf %107, %112 : vector<1x128xf32>
    %114 = arith.addf %96, %113 : vector<1x128xf32>
    %cst_26 = arith.constant 0.000000e+00 : f32
    %cst_27 = arith.constant 1.000000e+00 : f32
    %115 = vector.broadcast %cst_26 : f32 to vector<1x128xf32>
    %116 = arith.maximumf %115, %114 : vector<1x128xf32>
    %117 = vector.broadcast %cst_27 : f32 to vector<1x128xf32>
    %118 = arith.minimumf %117, %116 : vector<1x128xf32>
    %cst_28 = arith.constant dense<0.000000e+00> : vector<24x128xf32>
    %119 = tpu.matmul %1, %111, %cst_28 {dimension_numbers = #tpu.dot_dimension_numbers<[1], [0], [0], [1], [0, 0, 1, 1], [], []>} : vector<24x8xf32>, vector<8x128xf32>, vector<24x128xf32> -> vector<24x128xf32>
    %120 = vector.extract_strided_slice %119 {offsets = [0, 0], sizes = [8, 128], strides = [1, 1]} : vector<24x128xf32> to vector<8x128xf32>
    %121 = vector.extract_strided_slice %119 {offsets = [8, 0], sizes = [8, 128], strides = [1, 1]} : vector<24x128xf32> to vector<8x128xf32>
    %122 = vector.extract_strided_slice %119 {offsets = [16, 0], sizes = [1, 128], strides = [1, 1]} : vector<24x128xf32> to vector<1x128xf32>
    %cst_29 = arith.constant 1.000000e+00 : f32
    %123 = vector.broadcast %cst_29 : f32 to vector<1x128xf32>
    %124 = arith.subf %123, %122 : vector<1x128xf32>
    %125 = arith.mulf %122, %124 : vector<1x128xf32>
    %cst_30 = arith.constant 9.99999997E-7 : f32
    %126 = vector.broadcast %cst_30 : f32 to vector<1x128xf32>
    %127 = arith.maximumf %125, %126 : vector<1x128xf32>
    %128 = tpu.reciprocal %127 : vector<1x128xf32> -> vector<1x128xf32>
    %cst_31 = arith.constant 1.000000e+00 : f32
    %129 = vector.broadcast %cst_31 : f32 to vector<1x128xf32>
    %130 = arith.subf %129, %122 : vector<1x128xf32>
    %131 = arith.mulf %118, %130 : vector<1x128xf32>
    %132 = arith.mulf %131, %128 : vector<1x128xf32>
    %133 = arith.subf %118, %122 : vector<1x128xf32>
    %134 = arith.mulf %133, %122 : vector<1x128xf32>
    %135 = arith.mulf %134, %128 : vector<1x128xf32>
    %136 = arith.subf %118, %122 : vector<1x128xf32>
    %cst_32 = arith.constant 1.000000e+01 : f32
    %137 = vector.broadcast %cst_32 : f32 to vector<1x128xf32>
    %138 = arith.mulf %136, %137 : vector<1x128xf32>
    %139 = arith.negf %138 : vector<1x128xf32>
    %140 = math.exp %139 : vector<1x128xf32>
    %cst_33 = arith.constant 1.000000e+00 : f32
    %141 = vector.broadcast %cst_33 : f32 to vector<1x128xf32>
    %142 = arith.addf %141, %140 : vector<1x128xf32>
    %143 = arith.divf %141, %142 : vector<1x128xf32>
    %144 = arith.subf %121, %120 : vector<8x128xf32>
    %145 = vector.broadcast %143 : vector<1x128xf32> to vector<8x128xf32>
    %146 = arith.mulf %145, %144 : vector<8x128xf32>
    %147 = arith.addf %120, %146 : vector<8x128xf32>
    %148 = arith.subf %135, %132 : vector<1x128xf32>
    %149 = arith.mulf %143, %148 : vector<1x128xf32>
    %150 = arith.addf %132, %149 : vector<1x128xf32>
    %cst_34 = arith.constant 0.000000e+00 : f32
    %cst_35 = arith.constant 1.000000e+00 : f32
    %151 = vector.broadcast %cst_34 : f32 to vector<1x128xf32>
    %152 = arith.maximumf %151, %150 : vector<1x128xf32>
    %153 = vector.broadcast %cst_35 : f32 to vector<1x128xf32>
    %154 = arith.minimumf %153, %152 : vector<1x128xf32>
    %cst_36 = arith.constant dense<0.000000e+00> : vector<24x128xf32>
    %155 = tpu.matmul %1, %147, %cst_36 {dimension_numbers = #tpu.dot_dimension_numbers<[1], [0], [0], [1], [0, 0, 1, 1], [], []>} : vector<24x8xf32>, vector<8x128xf32>, vector<24x128xf32> -> vector<24x128xf32>
    %156 = vector.extract_strided_slice %155 {offsets = [0, 0], sizes = [8, 128], strides = [1, 1]} : vector<24x128xf32> to vector<8x128xf32>
    %157 = vector.extract_strided_slice %155 {offsets = [8, 0], sizes = [8, 128], strides = [1, 1]} : vector<24x128xf32> to vector<8x128xf32>
    %158 = vector.extract_strided_slice %155 {offsets = [16, 0], sizes = [1, 128], strides = [1, 1]} : vector<24x128xf32> to vector<1x128xf32>
    %159 = arith.subf %154, %158 : vector<1x128xf32>
    %cst_37 = arith.constant 1.000000e+01 : f32
    %160 = vector.broadcast %cst_37 : f32 to vector<1x128xf32>
    %161 = arith.mulf %159, %160 : vector<1x128xf32>
    %162 = arith.negf %161 : vector<1x128xf32>
    %163 = math.exp %162 : vector<1x128xf32>
    %cst_38 = arith.constant 1.000000e+00 : f32
    %164 = vector.broadcast %cst_38 : f32 to vector<1x128xf32>
    %165 = arith.addf %164, %163 : vector<1x128xf32>
    %166 = arith.divf %164, %165 : vector<1x128xf32>
    %167 = arith.subf %157, %156 : vector<8x128xf32>
    %168 = vector.broadcast %166 : vector<1x128xf32> to vector<8x128xf32>
    %169 = arith.mulf %168, %167 : vector<8x128xf32>
    %170 = arith.addf %156, %169 : vector<8x128xf32>
    %171 = vector.extract_strided_slice %1 {offsets = [17, 0], sizes = [1, 8], strides = [1, 1]} : vector<24x8xf32> to vector<1x8xf32>
    %cst_39 = arith.constant dense<0.000000e+00> : vector<1x128xf32>
    %172 = tpu.matmul %171, %170, %cst_39 {dimension_numbers = #tpu.dot_dimension_numbers<[1], [0], [0], [1], [0, 0, 1, 1], [], []>} : vector<1x8xf32>, vector<8x128xf32>, vector<1x128xf32> -> vector<1x128xf32>
    %c0_40 = arith.constant 0 : index
    %c0_41 = arith.constant 0 : index
    %173 = vector.load %arg3[%c0_40, %c0_41] : memref<1x128xf32, #tpu.memory_space<vmem>>, vector<1x128xf32>
    tpu.vector_store %arg3[%c0_40, %c0_41], %172 {strides = array<i32>} : memref<1x128xf32, #tpu.memory_space<vmem>>, vector<1x128xf32>,
    return
  }
  func.func @transform_0(%arg0: i32) -> (i32, i32) {
    %c0_i32 = arith.constant 0 : i32
    %c0_i32_0 = arith.constant 0 : i32
    return %c0_i32, %arg0 : i32, i32
  }
  func.func @transform_1(%arg0: i32) -> (i32, i32) {
    %c0_i32 = arith.constant 0 : i32
    %c0_i32_0 = arith.constant 0 : i32
    %c0_i32_1 = arith.constant 0 : i32
    return %c0_i32, %c0_i32_0 : i32, i32
  }
  func.func @transform_2(%arg0: i32) -> (i32, i32) {
    %c0_i32 = arith.constant 0 : i32
    %c0_i32_0 = arith.constant 0 : i32
    return %c0_i32, %arg0 : i32, i32
  }
}

</mosaic_0001>

<llo_original>
// kernel: tpu_custom_call.1
$region0: #{tpu_custom_call.1}
  #allocation0 [shape = 'u32[]', space=smem, size = 0x4, offset = 0x4, fixed_abs, tag = 'smem constant byte address 0x4 - core index']
  #allocation1 [shape = 'u32[144,128]{1,0:T(1,128)}', space=vmem, size = 0x12000, scoped, tag = 'internal scratch']
  %s0 = inlined_call_operand.vmem [shape: f32[1,16], index: 0, kind: input, shape index: {}]
  %s1 = inlined_call_operand.vmem [shape: f32[24,8], index: 1, kind: input, shape index: {}]
  %s2 = inlined_call_operand.hbm [shape: f32[1,16], index: 2, kind: output, shape index: {}]
  %s3 = sld [smem:[#allocation0]]
  $region18: #{tpu_custom_call.1} parent=0
    _
  %s5 = ssub.s32 1, %s3
  %s6 = scalar_select 0, %s5, %s3
  $region1: #{tpu_custom_call.1} parent=0
    #allocation2 [shape = 'u8[512]{0}', space=vmem, size = 0x400, scoped, tag = 'output window, operand 0, single buffered']
    #allocation3 [shape = 's32[1]{0}', space=sflag, size = 0x4, scoped, tag = 'scoped memory for tpu_custom_call.1']
    %7 = vsyncpa [#allocation3], 0
    // Predicated region
    $region2: #{tpu_custom_call.1} parent=1 // pred_check
      _
    $region3: #{tpu_custom_call.1} parent=1 // pred_check_branch
      %9 = sbr.rel (0) target = $region5
    $region4: #{tpu_custom_call.1} parent=1 // pred_region
      _
    $region5: #{tpu_custom_call.1} parent=1 // pred_fallthru
      _
    // Predicated region
    $region6: #{tpu_custom_call.1} parent=1 // pred_check
      _
    $region7: #{tpu_custom_call.1} parent=1 // pred_check_branch
      %11 = sbr.rel (0) target = $region9
    $region8: #{tpu_custom_call.1} parent=1 // pred_region
      _
    $region9: #{tpu_custom_call.1} parent=1 // pred_fallthru
      _
    %v12 = vld [vmem:[%s0] sm:$0x1]
    %v13 = vld [vmem:[%s1] sm:$0xff]
    %v14 = vld [vmem:[%s1 + $0x8] sm:$0xff]
    %v15 = vld [vmem:[%s1 + $0x10] sm:$0xff]
    %v16 = vlaneseq
    %v17 = vshrl.u32 %v16, 7
    %vm18 = vcmp.eq.s32.totalorder %v17, 0
    %v19 = vsel %vm18, 1, 0
    %v20 = vcvt.s32.f32 %v19
    %v21 = vmax.f32 %v12, 0.0
    %v22 = vmin.f32 %v21, 1.0
    %vm23 = vcmask 64512
    %v25 = vsel %vm23, %v13, 0
    %v28 = vsel %vm23, %v14, 0
    %v31 = vsel %vm23, %v15, 0
    %33 = vmatprep.subr.mxu0 0.0
    %34 = vmatpush1.msra.mxu0 %v20
    %35 = vmatprep.subr.mxu0 0.0
    %36 = vmatpush1.msra.mxu0 0.0
    %37 = vmatprep.subr.mxu0 0.0
    %38 = vmatpush1.msra.mxu0 0.0
    %39 = vmatprep.subr.mxu0 0.0
    %40 = vmatpush1.msra.mxu0 0.0
    %41 = vmatprep.subr.mxu0 0.0
    %42 = vmatpush1.msra.mxu0 0.0
    %43 = vmatprep.subr.mxu0 0.0
    %44 = vmatpush1.msra.mxu0 0.0
    %45 = vmatprep.subr.mxu0 0.0
    %46 = vmatpush1.msra.mxu0 0.0
    %47 = vmatprep.subr.mxu0 0.0
    %48 = vmatpush1.msra.mxu0 0.0
    %49 = vmatprep.subr.mxu0 0.0
    %50 = vmatpush1.msra.mxu0 0.0
    %51 = vmatprep.subr.mxu0 0.0
    %52 = vmatpush1.msra.mxu0 0.0
    %53 = vmatprep.subr.mxu0 0.0
    %54 = vmatpush1.msra.mxu0 0.0
    %55 = vmatprep.subr.mxu0 0.0
    %56 = vmatpush1.msra.mxu0 0.0
    %57 = vmatprep.subr.mxu0 0.0
    %58 = vmatpush1.msra.mxu0 0.0
    %59 = vmatprep.subr.mxu0 0.0
    %60 = vmatpush1.msra.mxu0 0.0
    %61 = vmatprep.subr.mxu0 0.0
    %62 = vmatpush1.msra.mxu0 0.0
    %63 = vmatprep.subr.mxu0 0.0
    %64 = vmatpush1.msra.mxu0 0.0
    %65 = vmatprep.subr.mxu0 0.0
    %66 = vmatpush1.msra.mxu0 0.0
    %67 = vmatprep.subr.mxu0 0.0
    %68 = vmatpush1.msra.mxu0 0.0
    %69 = vmatprep.subr.mxu0 0.0
    %70 = vmatpush1.msra.mxu0 0.0
    %71 = vmatprep.subr.mxu0 0.0
    %72 = vmatpush1.msra.mxu0 0.0
    %73 = vmatprep.subr.mxu0 0.0
    %74 = vmatpush1.msra.mxu0 0.0
    %75 = vmatprep.subr.mxu0 0.0
    %76 = vmatpush1.msra.mxu0 0.0
    %77 = vmatprep.subr.mxu0 0.0
    %78 = vmatpush1.msra.mxu0 0.0
    %79 = vmatprep.subr.mxu0 0.0
    %80 = vmatpush1.msra.mxu0 0.0
    %81 = vmatprep.subr.mxu0 0.0
    %82 = vmatpush1.msra.mxu0 0.0
    %83 = vmatprep.subr.mxu0 0.0
    %84 = vmatpush1.msra.mxu0 0.0
    %85 = vmatprep.subr.mxu0 0.0
    %86 = vmatpush1.msra.mxu0 0.0
    %87 = vmatprep.subr.mxu0 0.0
    %88 = vmatpush1.msra.mxu0 0.0
    %89 = vmatprep.subr.mxu0 0.0
    %90 = vmatpush1.msra.mxu0 0.0
    %91 = vmatprep.subr.mxu0 0.0
    %92 = vmatpush1.msra.mxu0 0.0
    %93 = vmatprep.subr.mxu0 0.0
    %94 = vmatpush1.msra.mxu0 0.0
    %95 = vmatprep.subr.mxu0 0.0
    %96 = vmatpush1.msra.mxu0 0.0
    %97 = vmatprep.mubr.f32.mxu0 0.0
    %98 = vmatmul.mubr.f32.gmra.mrb[0].mxu0 %v25
    %v99 = vpop.f32.mrb[0].mxu0
    %v100 = vadd.f32 0.0, %v99
    %v101 = vpop.f32.mrb[0].mxu0
    %102 = vmatprep.mubr.f32.mxu0 0.0
    %103 = vmatmul.mubr.f32.gmra.mrb[0].mxu0 %v28
    %v104 = vpop.f32.mrb[0].mxu0
    %v105 = vadd.f32 0.0, %v104
    %v106 = vpop.f32.mrb[0].mxu0
    %107 = vmatprep.mubr.f32.mxu0 0.0
    %108 = vmatmul.mubr.f32.gmra.mrb[0].mxu0 %v31
    %v109 = vpop.f32.mrb[0].mxu0
    %v110 = vadd.f32 0.0, %v109
    %v111 = vpop.f32.mrb[0].mxu0
    %112 = vdwg.mxu0
    %v113 = vsub.f32 1.0, %v110
    %v114 = vmul.f32 %v110, %v113
    %v115 = vmax.f32 %v114, 1e-06
    %v116 = vrcp.pop %v115
    %v117 = vmul.f32 %v22, %v113
    %v118 = vmul.f32 %v117, %v116
    %v119 = vsub.f32 %v22, %v110
    %v120 = vmul.f32 %v119, %v110
    %v121 = vmul.f32 %v120, %v116
    %v122 = vmul.f32 %v119, 10.0
    %v123 = vxor.u32 %v122, 2147483648
    %v124 = vmul.f32 %v123, 1.442695
    %v125 = vpow.pop %v124
    %v126 = vadd.f32 %v125, 1.0
    %v127 = vrcp.pop %v126
    %v128 = vmul.f32 1.0, %v127
    %v129 = vsub.f32 %v105, %v100
    %v131 = vlaneseq
    %v132 = vshrl.u32 %v131, 7
    %v133 = vsub.s32 0, %v132
    %v134 = vrot.slane %v128, %v133
    %v136 = vmul.f32 %v134, %v129
    %v137 = vadd.f32 %v100, %v136
    %v138 = vsub.f32 %v121, %v118
    %v139 = vmul.f32 %v128, %v138
    %v140 = vadd.f32 %v118, %v139
    %v141 = vmax.f32 %v140, 0.0
    %v142 = vmin.f32 %v141, 1.0
    %143 = vmatprep.subr.mxu0 0.0
    %144 = vmatpush1.msra.mxu0 %v137
    %145 = vmatprep.subr.mxu0 0.0
    %146 = vmatpush1.msra.mxu0 0.0
    %147 = vmatprep.subr.mxu0 0.0
    %148 = vmatpush1.msra.mxu0 0.0
    %149 = vmatprep.subr.mxu0 0.0
    %150 = vmatpush1.msra.mxu0 0.0
    %151 = vmatprep.subr.mxu0 0.0
    %152 = vmatpush1.msra.mxu0 0.0
    %153 = vmatprep.subr.mxu0 0.0
    %154 = vmatpush1.msra.mxu0 0.0
    %155 = vmatprep.subr.mxu0 0.0
    %156 = vmatpush1.msra.mxu0 0.0
    %157 = vmatprep.subr.mxu0 0.0
    %158 = vmatpush1.msra.mxu0 0.0
    %159 = vmatprep.subr.mxu0 0.0
    %160 = vmatpush1.msra.mxu0 0.0
    %161 = vmatprep.subr.mxu0 0.0
    %162 = vmatpush1.msra.mxu0 0.0
    %163 = vmatprep.subr.mxu0 0.0
    %164 = vmatpush1.msra.mxu0 0.0
    %165 = vmatprep.subr.mxu0 0.0
    %166 = vmatpush1.msra.mxu0 0.0
    %167 = vmatprep.subr.mxu0 0.0
    %168 = vmatpush1.msra.mxu0 0.0
    %169 = vmatprep.subr.mxu0 0.0
    %170 = vmatpush1.msra.mxu0 0.0
    %171 = vmatprep.subr.mxu0 0.0
    %172 = vmatpush1.msra.mxu0 0.0
    %173 = vmatprep.subr.mxu0 0.0
    %174 = vmatpush1.msra.mxu0 0.0
    %175 = vmatprep.subr.mxu0 0.0
    %176 = vmatpush1.msra.mxu0 0.0
    %177 = vmatprep.subr.mxu0 0.0
    %178 = vmatpush1.msra.mxu0 0.0
    %179 = vmatprep.subr.mxu0 0.0
    %180 = vmatpush1.msra.mxu0 0.0
    %181 = vmatprep.subr.mxu0 0.0
    %182 = vmatpush1.msra.mxu0 0.0
    %183 = vmatprep.subr.mxu0 0.0
    %184 = vmatpush1.msra.mxu0 0.0
    %185 = vmatprep.subr.mxu0 0.0
    %186 = vmatpush1.msra.mxu0 0.0
    %187 = vmatprep.subr.mxu0 0.0
    %188 = vmatpush1.msra.mxu0 0.0
    %189 = vmatprep.subr.mxu0 0.0
    %190 = vmatpush1.msra.mxu0 0.0
    %191 = vmatprep.subr.mxu0 0.0
    %192 = vmatpush1.msra.mxu0 0.0
    %193 = vmatprep.subr.mxu0 0.0
    %194 = vmatpush1.msra.mxu0 0.0
    %195 = vmatprep.subr.mxu0 0.0
    %196 = vmatpush1.msra.mxu0 0.0
    %197 = vmatprep.subr.mxu0 0.0
    %198 = vmatpush1.msra.mxu0 0.0
    %199 = vmatprep.subr.mxu0 0.0
    %200 = vmatpush1.msra.mxu0 0.0
    %201 = vmatprep.subr.mxu0 0.0
    %202 = vmatpush1.msra.mxu0 0.0
    %203 = vmatprep.subr.mxu0 0.0
    %204 = vmatpush1.msra.mxu0 0.0
    %205 = vmatprep.subr.mxu0 0.0
    %206 = vmatpush1.msra.mxu0 0.0
    %207 = vmatprep.mubr.f32.mxu0 0.0
    %208 = vmatmul.mubr.f32.gmra.mrb[0].mxu0 %v25
    %v209 = vpop.f32.mrb[0].mxu0
    %v210 = vadd.f32 0.0, %v209
    %v211 = vpop.f32.mrb[0].mxu0
    %212 = vmatprep.mubr.f32.mxu0 0.0
    %213 = vmatmul.mubr.f32.gmra.mrb[0].mxu0 %v28
    %v214 = vpop.f32.mrb[0].mxu0
    %v215 = vadd.f32 0.0, %v214
    %v216 = vpop.f32.mrb[0].mxu0
    %217 = vmatprep.mubr.f32.mxu0 0.0
    %218 = vmatmul.mubr.f32.gmra.mrb[0].mxu0 %v31
    %v219 = vpop.f32.mrb[0].mxu0
    %v220 = vadd.f32 0.0, %v219
    %v221 = vpop.f32.mrb[0].mxu0
    %222 = vdwg.mxu0
    %v223 = vsub.f32 1.0, %v220
    %v224 = vmul.f32 %v220, %v223
    %v225 = vmax.f32 %v224, 1e-06
    %v226 = vrcp.pop %v225
    %v227 = vmul.f32 %v142, %v223
    %v228 = vmul.f32 %v227, %v226
    %v229 = vsub.f32 %v142, %v220
    %v230 = vmul.f32 %v229, %v220
    %v231 = vmul.f32 %v230, %v226
    %v232 = vmul.f32 %v229, 10.0
    %v233 = vxor.u32 %v232, 2147483648
    %v234 = vmul.f32 %v233, 1.442695
    %v235 = vpow.pop %v234
    %v236 = vadd.f32 %v235, 1.0
    %v237 = vrcp.pop %v236
    %v238 = vmul.f32 1.0, %v237
    %v239 = vsub.f32 %v215, %v210
    %v241 = vlaneseq
    %v242 = vshrl.u32 %v241, 7
    %v243 = vsub.s32 0, %v242
    %v244 = vrot.slane %v238, %v243
    %v246 = vmul.f32 %v244, %v239
    %v247 = vadd.f32 %v210, %v246
    %v248 = vsub.f32 %v231, %v228
    %v249 = vmul.f32 %v238, %v248
    %v250 = vadd.f32 %v228, %v249
    %v251 = vmax.f32 %v250, 0.0
    %v252 = vmin.f32 %v251, 1.0
    %253 = vmatprep.subr.mxu0 0.0
    %254 = vmatpush1.msra.mxu0 %v247
    %255 = vmatprep.subr.mxu0 0.0
    %256 = vmatpush1.msra.mxu0 0.0
    %257 = vmatprep.subr.mxu0 0.0
    %258 = vmatpush1.msra.mxu0 0.0
    %259 = vmatprep.subr.mxu0 0.0
    %260 = vmatpush1.msra.mxu0 0.0
    %261 = vmatprep.subr.mxu0 0.0
    %262 = vmatpush1.msra.mxu0 0.0
    %263 = vmatprep.subr.mxu0 0.0
    %264 = vmatpush1.msra.mxu0 0.0
    %265 = vmatprep.subr.mxu0 0.0
    %266 = vmatpush1.msra.mxu0 0.0
    %267 = vmatprep.subr.mxu0 0.0
    %268 = vmatpush1.msra.mxu0 0.0
    %269 = vmatprep.subr.mxu0 0.0
    %270 = vmatpush1.msra.mxu0 0.0
    %271 = vmatprep.subr.mxu0 0.0
    %272 = vmatpush1.msra.mxu0 0.0
    %273 = vmatprep.subr.mxu0 0.0
    %274 = vmatpush1.msra.mxu0 0.0
    %275 = vmatprep.subr.mxu0 0.0
    %276 = vmatpush1.msra.mxu0 0.0
    %277 = vmatprep.subr.mxu0 0.0
    %278 = vmatpush1.msra.mxu0 0.0
    %279 = vmatprep.subr.mxu0 0.0
    %280 = vmatpush1.msra.mxu0 0.0
    %281 = vmatprep.subr.mxu0 0.0
    %282 = vmatpush1.msra.mxu0 0.0
    %283 = vmatprep.subr.mxu0 0.0
    %284 = vmatpush1.msra.mxu0 0.0
    %285 = vmatprep.subr.mxu0 0.0
    %286 = vmatpush1.msra.mxu0 0.0
    %287 = vmatprep.subr.mxu0 0.0
    %288 = vmatpush1.msra.mxu0 0.0
    %289 = vmatprep.subr.mxu0 0.0
    %290 = vmatpush1.msra.mxu0 0.0
    %291 = vmatprep.subr.mxu0 0.0
    %292 = vmatpush1.msra.mxu0 0.0
    %293 = vmatprep.subr.mxu0 0.0
    %294 = vmatpush1.msra.mxu0 0.0
    %295 = vmatprep.subr.mxu0 0.0
    %296 = vmatpush1.msra.mxu0 0.0
    %297 = vmatprep.subr.mxu0 0.0
    %298 = vmatpush1.msra.mxu0 0.0
    %299 = vmatprep.subr.mxu0 0.0
    %300 = vmatpush1.msra.mxu0 0.0
    %301 = vmatprep.subr.mxu0 0.0
    %302 = vmatpush1.msra.mxu0 0.0
    %303 = vmatprep.subr.mxu0 0.0
    %304 = vmatpush1.msra.mxu0 0.0
    %305 = vmatprep.subr.mxu0 0.0
    %306 = vmatpush1.msra.mxu0 0.0
    %307 = vmatprep.subr.mxu0 0.0
    %308 = vmatpush1.msra.mxu0 0.0
    %309 = vmatprep.subr.mxu0 0.0
    %310 = vmatpush1.msra.mxu0 0.0
    %311 = vmatprep.subr.mxu0 0.0
    %312 = vmatpush1.msra.mxu0 0.0
    %313 = vmatprep.subr.mxu0 0.0
    %314 = vmatpush1.msra.mxu0 0.0
    %315 = vmatprep.subr.mxu0 0.0
    %316 = vmatpush1.msra.mxu0 0.0
    %317 = vmatprep.mubr.f32.mxu0 0.0
    %318 = vmatmul.mubr.f32.gmra.mrb[0].mxu0 %v25
    %v319 = vpop.f32.mrb[0].mxu0
    %v320 = vadd.f32 0.0, %v319
    %v321 = vpop.f32.mrb[0].mxu0
    %322 = vmatprep.mubr.f32.mxu0 0.0
    %323 = vmatmul.mubr.f32.gmra.mrb[0].mxu0 %v28
    %v324 = vpop.f32.mrb[0].mxu0
    %v325 = vadd.f32 0.0, %v324
    %v326 = vpop.f32.mrb[0].mxu0
    %327 = vmatprep.mubr.f32.mxu0 0.0
    %328 = vmatmul.mubr.f32.gmra.mrb[0].mxu0 %v31
    %v329 = vpop.f32.mrb[0].mxu0
    %v330 = vadd.f32 0.0, %v329
    %v331 = vpop.f32.mrb[0].mxu0
    %332 = vdwg.mxu0
    %v333 = vsub.f32 1.0, %v330
    %v334 = vmul.f32 %v330, %v333
    %v335 = vmax.f32 %v334, 1e-06
    %v336 = vrcp.pop %v335
    %v337 = vmul.f32 %v252, %v333
    %v338 = vmul.f32 %v337, %v336
    %v339 = vsub.f32 %v252, %v330
    %v340 = vmul.f32 %v339, %v330
    %v341 = vmul.f32 %v340, %v336
    %v342 = vmul.f32 %v339, 10.0
    %v343 = vxor.u32 %v342, 2147483648
    %v344 = vmul.f32 %v343, 1.442695
    %v345 = vpow.pop %v344
    %v346 = vadd.f32 %v345, 1.0
    %v347 = vrcp.pop %v346
    %v348 = vmul.f32 1.0, %v347
    %v349 = vsub.f32 %v325, %v320
    %v351 = vlaneseq
    %v352 = vshrl.u32 %v351, 7
    %v353 = vsub.s32 0, %v352
    %v354 = vrot.slane %v348, %v353
    %v356 = vmul.f32 %v354, %v349
    %v357 = vadd.f32 %v320, %v356
    %v358 = vsub.f32 %v341, %v338
    %v359 = vmul.f32 %v348, %v358
    %v360 = vadd.f32 %v338, %v359
    %v361 = vmax.f32 %v360, 0.0
    %v362 = vmin.f32 %v361, 1.0
    %363 = vmatprep.subr.mxu0 0.0
    %364 = vmatpush1.msra.mxu0 %v357
    %365 = vmatprep.subr.mxu0 0.0
    %366 = vmatpush1.msra.mxu0 0.0
    %367 = vmatprep.subr.mxu0 0.0
    %368 = vmatpush1.msra.mxu0 0.0
    %369 = vmatprep.subr.mxu0 0.0
    %370 = vmatpush1.msra.mxu0 0.0
    %371 = vmatprep.subr.mxu0 0.0
    %372 = vmatpush1.msra.mxu0 0.0
    %373 = vmatprep.subr.mxu0 0.0
    %374 = vmatpush1.msra.mxu0 0.0
    %375 = vmatprep.subr.mxu0 0.0
    %376 = vmatpush1.msra.mxu0 0.0
    %377 = vmatprep.subr.mxu0 0.0
    %378 = vmatpush1.msra.mxu0 0.0
    %379 = vmatprep.subr.mxu0 0.0
    %380 = vmatpush1.msra.mxu0 0.0
    %381 = vmatprep.subr.mxu0 0.0
    %382 = vmatpush1.msra.mxu0 0.0
    %383 = vmatprep.subr.mxu0 0.0
    %384 = vmatpush1.msra.mxu0 0.0
    %385 = vmatprep.subr.mxu0 0.0
    %386 = vmatpush1.msra.mxu0 0.0
    %387 = vmatprep.subr.mxu0 0.0
    %388 = vmatpush1.msra.mxu0 0.0
    %389 = vmatprep.subr.mxu0 0.0
    %390 = vmatpush1.msra.mxu0 0.0
    %391 = vmatprep.subr.mxu0 0.0
    %392 = vmatpush1.msra.mxu0 0.0
    %393 = vmatprep.subr.mxu0 0.0
    %394 = vmatpush1.msra.mxu0 0.0
    %395 = vmatprep.subr.mxu0 0.0
    %396 = vmatpush1.msra.mxu0 0.0
    %397 = vmatprep.subr.mxu0 0.0
    %398 = vmatpush1.msra.mxu0 0.0
    %399 = vmatprep.subr.mxu0 0.0
    %400 = vmatpush1.msra.mxu0 0.0
    %401 = vmatprep.subr.mxu0 0.0
    %402 = vmatpush1.msra.mxu0 0.0
    %403 = vmatprep.subr.mxu0 0.0
    %404 = vmatpush1.msra.mxu0 0.0
    %405 = vmatprep.subr.mxu0 0.0
    %406 = vmatpush1.msra.mxu0 0.0
    %407 = vmatprep.subr.mxu0 0.0
    %408 = vmatpush1.msra.mxu0 0.0
    %409 = vmatprep.subr.mxu0 0.0
    %410 = vmatpush1.msra.mxu0 0.0
    %411 = vmatprep.subr.mxu0 0.0
    %412 = vmatpush1.msra.mxu0 0.0
    %413 = vmatprep.subr.mxu0 0.0
    %414 = vmatpush1.msra.mxu0 0.0
    %415 = vmatprep.subr.mxu0 0.0
    %416 = vmatpush1.msra.mxu0 0.0
    %417 = vmatprep.subr.mxu0 0.0
    %418 = vmatpush1.msra.mxu0 0.0
    %419 = vmatprep.subr.mxu0 0.0
    %420 = vmatpush1.msra.mxu0 0.0
    %421 = vmatprep.subr.mxu0 0.0
    %422 = vmatpush1.msra.mxu0 0.0
    %423 = vmatprep.subr.mxu0 0.0
    %424 = vmatpush1.msra.mxu0 0.0
    %425 = vmatprep.subr.mxu0 0.0
    %426 = vmatpush1.msra.mxu0 0.0
    %427 = vmatprep.mubr.f32.mxu0 0.0
    %428 = vmatmul.mubr.f32.gmra.mrb[0].mxu0 %v25
    %v429 = vpop.f32.mrb[0].mxu0
    %v430 = vadd.f32 0.0, %v429
    %v431 = vpop.f32.mrb[0].mxu0
    %432 = vmatprep.mubr.f32.mxu0 0.0
    %433 = vmatmul.mubr.f32.gmra.mrb[0].mxu0 %v28
    %v434 = vpop.f32.mrb[0].mxu0
    %v435 = vadd.f32 0.0, %v434
    %v436 = vpop.f32.mrb[0].mxu0
    %437 = vmatprep.mubr.f32.mxu0 0.0
    %438 = vmatmul.mubr.f32.gmra.mrb[0].mxu0 %v31
    %v439 = vpop.f32.mrb[0].mxu0
    %v440 = vadd.f32 0.0, %v439
    %v441 = vpop.f32.mrb[0].mxu0
    %442 = vdwg.mxu0
    %v443 = vsub.f32 1.0, %v440
    %v444 = vmul.f32 %v440, %v443
    %v445 = vmax.f32 %v444, 1e-06
    %v446 = vrcp.pop %v445
    %v447 = vmul.f32 %v362, %v443
    %v448 = vmul.f32 %v447, %v446
    %v449 = vsub.f32 %v362, %v440
    %v450 = vmul.f32 %v449, %v440
    %v451 = vmul.f32 %v450, %v446
    %v452 = vmul.f32 %v449, 10.0
    %v453 = vxor.u32 %v452, 2147483648
    %v454 = vmul.f32 %v453, 1.442695
    %v455 = vpow.pop %v454
    %v456 = vadd.f32 %v455, 1.0
    %v457 = vrcp.pop %v456
    %v458 = vmul.f32 1.0, %v457
    %v459 = vsub.f32 %v435, %v430
    %v461 = vlaneseq
    %v462 = vshrl.u32 %v461, 7
    %v463 = vsub.s32 0, %v462
    %v464 = vrot.slane %v458, %v463
    %v466 = vmul.f32 %v464, %v459
    %v467 = vadd.f32 %v430, %v466
    %v468 = vsub.f32 %v451, %v448
    %v469 = vmul.f32 %v458, %v468
    %v470 = vadd.f32 %v448, %v469
    %v471 = vmax.f32 %v470, 0.0
    %v472 = vmin.f32 %v471, 1.0
    %473 = vmatprep.subr.mxu0 0.0
    %474 = vmatpush1.msra.mxu0 %v467
    %475 = vmatprep.subr.mxu0 0.0
    %476 = vmatpush1.msra.mxu0 0.0
    %477 = vmatprep.subr.mxu0 0.0
    %478 = vmatpush1.msra.mxu0 0.0
    %479 = vmatprep.subr.mxu0 0.0
    %480 = vmatpush1.msra.mxu0 0.0
    %481 = vmatprep.subr.mxu0 0.0
    %482 = vmatpush1.msra.mxu0 0.0
    %483 = vmatprep.subr.mxu0 0.0
    %484 = vmatpush1.msra.mxu0 0.0
    %485 = vmatprep.subr.mxu0 0.0
    %486 = vmatpush1.msra.mxu0 0.0
    %487 = vmatprep.subr.mxu0 0.0
    %488 = vmatpush1.msra.mxu0 0.0
    %489 = vmatprep.subr.mxu0 0.0
    %490 = vmatpush1.msra.mxu0 0.0
    %491 = vmatprep.subr.mxu0 0.0
    %492 = vmatpush1.msra.mxu0 0.0
    %493 = vmatprep.subr.mxu0 0.0
    %494 = vmatpush1.msra.mxu0 0.0
    %495 = vmatprep.subr.mxu0 0.0
    %496 = vmatpush1.msra.mxu0 0.0
    %497 = vmatprep.subr.mxu0 0.0
    %498 = vmatpush1.msra.mxu0 0.0
    %499 = vmatprep.subr.mxu0 0.0
    %500 = vmatpush1.msra.mxu0 0.0
    %501 = vmatprep.subr.mxu0 0.0
    %502 = vmatpush1.msra.mxu0 0.0
    %503 = vmatprep.subr.mxu0 0.0
    %504 = vmatpush1.msra.mxu0 0.0
    %505 = vmatprep.subr.mxu0 0.0
    %506 = vmatpush1.msra.mxu0 0.0
    %507 = vmatprep.subr.mxu0 0.0
    %508 = vmatpush1.msra.mxu0 0.0
    %509 = vmatprep.subr.mxu0 0.0
    %510 = vmatpush1.msra.mxu0 0.0
    %511 = vmatprep.subr.mxu0 0.0
    %512 = vmatpush1.msra.mxu0 0.0
    %513 = vmatprep.subr.mxu0 0.0
    %514 = vmatpush1.msra.mxu0 0.0
    %515 = vmatprep.subr.mxu0 0.0
    %516 = vmatpush1.msra.mxu0 0.0
    %517 = vmatprep.subr.mxu0 0.0
    %518 = vmatpush1.msra.mxu0 0.0
    %519 = vmatprep.subr.mxu0 0.0
    %520 = vmatpush1.msra.mxu0 0.0
    %521 = vmatprep.subr.mxu0 0.0
    %522 = vmatpush1.msra.mxu0 0.0
    %523 = vmatprep.subr.mxu0 0.0
    %524 = vmatpush1.msra.mxu0 0.0
    %525 = vmatprep.subr.mxu0 0.0
    %526 = vmatpush1.msra.mxu0 0.0
    %527 = vmatprep.subr.mxu0 0.0
    %528 = vmatpush1.msra.mxu0 0.0
    %529 = vmatprep.subr.mxu0 0.0
    %530 = vmatpush1.msra.mxu0 0.0
    %531 = vmatprep.subr.mxu0 0.0
    %532 = vmatpush1.msra.mxu0 0.0
    %533 = vmatprep.subr.mxu0 0.0
    %534 = vmatpush1.msra.mxu0 0.0
    %535 = vmatprep.subr.mxu0 0.0
    %536 = vmatpush1.msra.mxu0 0.0
    %537 = vmatprep.mubr.f32.mxu0 0.0
    %538 = vmatmul.mubr.f32.gmra.mrb[0].mxu0 %v25
    %v539 = vpop.f32.mrb[0].mxu0
    %v540 = vadd.f32 0.0, %v539
    %v541 = vpop.f32.mrb[0].mxu0
    %542 = vmatprep.mubr.f32.mxu0 0.0
    %543 = vmatmul.mubr.f32.gmra.mrb[0].mxu0 %v28
    %v544 = vpop.f32.mrb[0].mxu0
    %v545 = vadd.f32 0.0, %v544
    %v546 = vpop.f32.mrb[0].mxu0
    %547 = vmatprep.mubr.f32.mxu0 0.0
    %548 = vmatmul.mubr.f32.gmra.mrb[0].mxu0 %v31
    %v549 = vpop.f32.mrb[0].mxu0
    %v550 = vadd.f32 0.0, %v549
    %v551 = vpop.f32.mrb[0].mxu0
    %552 = vdwg.mxu0
    %v553 = vsub.f32 %v472, %v550
    %v554 = vmul.f32 %v553, 10.0
    %v555 = vxor.u32 %v554, 2147483648
    %v556 = vmul.f32 %v555, 1.442695
    %v557 = vpow.pop %v556
    %v558 = vadd.f32 %v557, 1.0
    %v559 = vrcp.pop %v558
    %v560 = vmul.f32 1.0, %v559
    %v561 = vsub.f32 %v545, %v540
    %v563 = vlaneseq
    %v564 = vshrl.u32 %v563, 7
    %v565 = vsub.s32 0, %v564
    %v566 = vrot.slane %v560, %v565
    %v568 = vmul.f32 %v566, %v561
    %v569 = vadd.f32 %v540, %v568
    %v570 = vrot.slane %v15, 1
    %v571 = vsel %vm23, %v570, 0
    %573 = vmatprep.subr.mxu0 0.0
    %574 = vmatpush1.msra.mxu0 %v569
    %575 = vmatprep.subr.mxu0 0.0
    %576 = vmatpush1.msra.mxu0 0.0
    %577 = vmatprep.subr.mxu0 0.0
    %578 = vmatpush1.msra.mxu0 0.0
    %579 = vmatprep.subr.mxu0 0.0
    %580 = vmatpush1.msra.mxu0 0.0
    %581 = vmatprep.subr.mxu0 0.0
    %582 = vmatpush1.msra.mxu0 0.0
    %583 = vmatprep.subr.mxu0 0.0
    %584 = vmatpush1.msra.mxu0 0.0
    %585 = vmatprep.subr.mxu0 0.0
    %586 = vmatpush1.msra.mxu0 0.0
    %587 = vmatprep.subr.mxu0 0.0
    %588 = vmatpush1.msra.mxu0 0.0
    %589 = vmatprep.subr.mxu0 0.0
    %590 = vmatpush1.msra.mxu0 0.0
    %591 = vmatprep.subr.mxu0 0.0
    %592 = vmatpush1.msra.mxu0 0.0
    %593 = vmatprep.subr.mxu0 0.0
    %594 = vmatpush1.msra.mxu0 0.0
    %595 = vmatprep.subr.mxu0 0.0
    %596 = vmatpush1.msra.mxu0 0.0
    %597 = vmatprep.subr.mxu0 0.0
    %598 = vmatpush1.msra.mxu0 0.0
    %599 = vmatprep.subr.mxu0 0.0
    %600 = vmatpush1.msra.mxu0 0.0
    %601 = vmatprep.subr.mxu0 0.0
    %602 = vmatpush1.msra.mxu0 0.0
    %603 = vmatprep.subr.mxu0 0.0
    %604 = vmatpush1.msra.mxu0 0.0
    %605 = vmatprep.subr.mxu0 0.0
    %606 = vmatpush1.msra.mxu0 0.0
    %607 = vmatprep.subr.mxu0 0.0
    %608 = vmatpush1.msra.mxu0 0.0
    %609 = vmatprep.subr.mxu0 0.0
    %610 = vmatpush1.msra.mxu0 0.0
    %611 = vmatprep.subr.mxu0 0.0
    %612 = vmatpush1.msra.mxu0 0.0
    %613 = vmatprep.subr.mxu0 0.0
    %614 = vmatpush1.msra.mxu0 0.0
    %615 = vmatprep.subr.mxu0 0.0
    %616 = vmatpush1.msra.mxu0 0.0
    %617 = vmatprep.subr.mxu0 0.0
    %618 = vmatpush1.msra.mxu0 0.0
    %619 = vmatprep.subr.mxu0 0.0
    %620 = vmatpush1.msra.mxu0 0.0
    %621 = vmatprep.subr.mxu0 0.0
    %622 = vmatpush1.msra.mxu0 0.0
    %623 = vmatprep.subr.mxu0 0.0
    %624 = vmatpush1.msra.mxu0 0.0
    %625 = vmatprep.subr.mxu0 0.0
    %626 = vmatpush1.msra.mxu0 0.0
    %627 = vmatprep.subr.mxu0 0.0
    %628 = vmatpush1.msra.mxu0 0.0
    %629 = vmatprep.subr.mxu0 0.0
    %630 = vmatpush1.msra.mxu0 0.0
    %631 = vmatprep.subr.mxu0 0.0
    %632 = vmatpush1.msra.mxu0 0.0
    %633 = vmatprep.subr.mxu0 0.0
    %634 = vmatpush1.msra.mxu0 0.0
    %635 = vmatprep.subr.mxu0 0.0
    %636 = vmatpush1.msra.mxu0 0.0
    %637 = vmatprep.mubr.f32.mxu0 0.0
    %638 = vmatmul.mubr.f32.gmra.mrb[0].mxu0 %v571
    %v639 = vpop.f32.mrb[0].mxu0
    %v640 = vadd.f32 0.0, %v639
    %v641 = vpop.f32.mrb[0].mxu0
    %642 = vdwg.mxu0
    %643 = vst [vmem:[#allocation2] sm:$0x1] %v640
    // Predicated region
    $region10: #{tpu_custom_call.1} parent=1 // pred_check
      _
    $region11: #{tpu_custom_call.1} parent=1 // pred_check_branch
      %645 = sbr.rel (0) target = $region13
    $region12: #{tpu_custom_call.1} parent=1 // pred_region
      %s647 = ssub.s32 16, 16
      %648 = vsyncadd [#allocation3], %s647
      %s650 = sshll.u32 [#allocation2], 4
      %s651 = int_to_ptr.vmem [resolvable:$true] %s650
      %653 = dma.vmem_to_hbm [thread:$0]  %s651, 16, %s2, [#allocation3]
    $region13: #{tpu_custom_call.1} parent=1 // pred_fallthru
      _
    // Predicated region
    $region14: #{tpu_custom_call.1} parent=1 // pred_check
      _
    $region15: #{tpu_custom_call.1} parent=1 // pred_check_branch
      %655 = sbr.rel (0) target = $region17
    $region16: #{tpu_custom_call.1} parent=1 // pred_region
      %656 = dma.done [#allocation3], 16
    $region17: #{tpu_custom_call.1} parent=1 // pred_fallthru
      _
    %657 = vsyncpa [#allocation3], 1

</llo_original>
